<compile_context>
chip_gen: v5e
topology: v5e:2x2
jax: 0.10.0
libtpu: 0.0.40
codegen_flags: <defaults>
</compile_context>

<pallas_src>
import jax
import jax.numpy as jnp
from jax import lax
from jax.experimental import pallas as pl
from jax.experimental.pallas import tpu as pltpu


def _round_up(x, m):
    return ((x + m - 1) // m) * m


def _svm_kernel_single_k(x_ref, w_ref, b_ref, o_ref):
    """Whole K in one tile: out_tile = x_tile @ w_tile^T + b_tile (f32 accumulate)."""
    acc = lax.dot_general(
        x_ref[...],
        w_ref[...],
        dimension_numbers=(((1,), (1,)), ((), ())),
        preferred_element_type=jnp.float32,
    )
    o_ref[...] = (acc + b_ref[...]).astype(o_ref.dtype)


def _svm_kernel_multi_k(x_ref, w_ref, b_ref, o_ref, acc_ref):
    """One (i, j, k) grid step of out = x @ W^T + b with a persistent f32 accumulator."""
    k = pl.program_id(2)

    @pl.when(k == 0)
    def _():
        acc_ref[...] = jnp.zeros_like(acc_ref)

    acc_ref[...] += lax.dot_general(
        x_ref[...],
        w_ref[...],
        dimension_numbers=(((1,), (1,)), ((), ())),
        preferred_element_type=jnp.float32,
    )

    @pl.when(k == pl.num_programs(2) - 1)
    def _():
        o_ref[...] = (acc_ref[...] + b_ref[...]).astype(o_ref.dtype)


def svm_forward(x, weight, bias, *, tm=256, tn=256, tk=512,
                compute_dtype=jnp.bfloat16):
    """x: (..., D), weight: (C, D) PyTorch layout, bias: (C,) -> (..., C) f32 logits."""
    orig_shape = x.shape
    D = orig_shape[-1]
    x2 = x.reshape(-1, D)
    B = x2.shape[0]
    C, D2 = weight.shape
    assert D == D2 and bias.shape == (C,)

    # Tile clamping: M needs sublane (8) alignment only; N, K need lane (128) alignment.
    tm = min(tm, _round_up(B, 8))
    tn = min(tn, _round_up(C, 128))   # lane-dense output
    tk = min(tk, _round_up(D, 128))
    Mp, Np, Kp = _round_up(B, tm), _round_up(C, tn), _round_up(D, tk)

    # Pad to tile multiples (zero K-padding contributes nothing to the dot) and cast
    # once in HBM so the kernel streams half-width operands.
    xp = x2 if (Mp == B and Kp == D) else jnp.pad(x2, ((0, Mp - B), (0, Kp - D)))
    wp = weight if (Np == C and Kp == D) else jnp.pad(weight, ((0, Np - C), (0, Kp - D)))
    xp = xp.astype(compute_dtype)
    wp = wp.astype(compute_dtype)
    bp = jnp.pad(bias, (0, Np - C)).astype(jnp.float32).reshape(1, Np)

    gm, gn, gk = Mp // tm, Np // tn, Kp // tk
    itemsize = jnp.dtype(compute_dtype).itemsize

    cost = pl.CostEstimate(
        flops=2 * B * D * C,
        transcendentals=0,
        bytes_accessed=(xp.size * itemsize + wp.size * itemsize
                        + bp.size * 4 + Mp * Np * 4),
    )

    if gk == 1:
        # Single-pass path: no accumulator scratch, no reduction axis.
        vmem_need = (2 * (tm * tk + tn * tk) * itemsize
                     + 2 * tn * 4
                     + 2 * tm * tn * 4)
        vmem_limit = int(min(max(2 * vmem_need, 16 * 1024 * 1024), 64 * 1024 * 1024))
        out_p = pl.pallas_call(
            _svm_kernel_single_k,
            out_shape=jax.ShapeDtypeStruct((Mp, Np), jnp.float32),
            grid_spec=pltpu.PrefetchScalarGridSpec(
                num_scalar_prefetch=0,
                grid=(gm, gn),
                in_specs=[
                    pl.BlockSpec((tm, tk), lambda i, j: (i, 0)),   # x tile
                    pl.BlockSpec((tn, tk), lambda i, j: (j, 0)),   # W tile (C, D) layout
                    pl.BlockSpec((1, tn), lambda i, j: (0, j)),    # bias tile
                ],
                out_specs=pl.BlockSpec((tm, tn), lambda i, j: (i, j)),
            ),
            compiler_params=pltpu.CompilerParams(
                dimension_semantics=("parallel", "parallel"),
                vmem_limit_bytes=vmem_limit,
            ),
            cost_estimate=cost,
        )(xp, wp, bp)
    else:
        # Reduction path: K axis last, accumulator resident across it.
        vmem_need = (2 * (tm * tk + tn * tk) * itemsize
                     + 2 * tn * 4
                     + 3 * tm * tn * 4)
        vmem_limit = int(min(max(2 * vmem_need, 16 * 1024 * 1024), 64 * 1024 * 1024))
        out_p = pl.pallas_call(
            _svm_kernel_multi_k,
            out_shape=jax.ShapeDtypeStruct((Mp, Np), jnp.float32),
            grid_spec=pltpu.PrefetchScalarGridSpec(
                num_scalar_prefetch=0,
                grid=(gm, gn, gk),
                in_specs=[
                    pl.BlockSpec((tm, tk), lambda i, j, k: (i, k)),   # x tile
                    pl.BlockSpec((tn, tk), lambda i, j, k: (j, k)),   # W tile (C, D)
                    pl.BlockSpec((1, tn), lambda i, j, k: (0, j)),    # bias tile
                ],
                out_specs=pl.BlockSpec((tm, tn), lambda i, j, k: (i, j)),
                scratch_shapes=[pltpu.VMEM((tm, tn), jnp.float32)],
            ),
            compiler_params=pltpu.CompilerParams(
                dimension_semantics=("parallel", "parallel", "arbitrary"),
                vmem_limit_bytes=vmem_limit,
            ),
            cost_estimate=cost,
        )(xp, wp, bp)

    out = out_p[:B, :C]
    return out.reshape(orig_shape[:-1] + (C,))


if __name__ == "__main__":
    # Small shapes consistent with the module: flat feature input -> class logits.
    batch, input_dim, num_classes = 8, 32, 16

    key = jax.random.PRNGKey(0)
    kx, kw, kb = jax.random.split(key, 3)

    # Deterministic init mimicking nn.Linear's default U(-1/sqrt(D), 1/sqrt(D)).
    bound = 1.0 / jnp.sqrt(jnp.float32(input_dim))
    weight = jax.random.uniform(kw, (num_classes, input_dim),
                                minval=-bound, maxval=bound, dtype=jnp.float32)
    bias = jax.random.uniform(kb, (num_classes,),
                              minval=-bound, maxval=bound, dtype=jnp.float32)
    x = jax.random.normal(kx, (batch, input_dim), dtype=jnp.float32)

    out = svm_forward(x, weight, bias)
    out = jax.block_until_ready(out)

    # Reference checks in plain JAX.
    ref_f32 = x @ weight.T + bias
    ref_bf16 = (jnp.dot(x.astype(jnp.bfloat16), weight.astype(jnp.bfloat16).T,
                        preferred_element_type=jnp.float32) + bias)

    assert out.shape == (batch, num_classes)
    # Matches the same-precision (bf16 operands, f32 accumulate) reference tightly,
    # and the full-f32 reference within bf16 rounding error.
    assert jnp.allclose(out, ref_bf16, atol=2e-3, rtol=2e-3)
    assert jnp.allclose(out, ref_f32, atol=5e-2, rtol=5e-2)

    # Exercise the multi-K reduction path too (larger K forces grid_k > 1).
    big_D = 1024
    kx2, kw2, kb2 = jax.random.split(jax.random.PRNGKey(1), 3)
    x2 = jax.random.normal(kx2, (16, big_D), dtype=jnp.float32)
    w2 = jax.random.normal(kw2, (num_classes, big_D), dtype=jnp.float32) * 0.02
    b2 = jax.random.normal(kb2, (num_classes,), dtype=jnp.float32) * 0.02
    out2 = jax.block_until_ready(svm_forward(x2, w2, b2, tk=512))
    ref2 = (jnp.dot(x2.astype(jnp.bfloat16), w2.astype(jnp.bfloat16).T,
                    preferred_element_type=jnp.float32) + b2)
    assert jnp.allclose(out2, ref2, atol=5e-2, rtol=5e-2)

    print("KERNEL_OK")
</pallas_src>

<mosaic_0001>
module attributes {stable_mosaic.version = 11 : i64} {
  func.func @_svm_kernel_single_k(%arg0: i32, %arg1: i32, %arg2: memref<8x128xbf16, #tpu.memory_space<vmem>>, %arg3: memref<128x128xbf16, #tpu.memory_space<vmem>>, %arg4: memref<1x128xf32, #tpu.memory_space<vmem>>, %arg5: memref<8x128xf32, #tpu.memory_space<vmem>>) attributes {dimension_semantics = [#tpu.dimension_semantics<parallel>, #tpu.dimension_semantics<parallel>], iteration_bounds = array<i64: 1, 1>, scalar_prefetch = 0 : i64, scratch_operands = 0 : i64, tpu.core_type = #tpu.core_type<tc>, window_params = [{transform_indices = @transform_0, window_bounds = array<i64: 8, 128>}, {transform_indices = @transform_1, window_bounds = array<i64: 128, 128>}, {transform_indices = @transform_2, window_bounds = array<i64: 1, 128>}, {transform_indices = @transform_3, window_bounds = array<i64: 8, 128>}]} {
    %c0 = arith.constant 0 : index
    %c0_0 = arith.constant 0 : index
    %0 = vector.load %arg2[%c0, %c0_0] : memref<8x128xbf16, #tpu.memory_space<vmem>>, vector<8x128xbf16>
    %c0_1 = arith.constant 0 : index
    %c0_2 = arith.constant 0 : index
    %1 = vector.load %arg3[%c0_1, %c0_2] : memref<128x128xbf16, #tpu.memory_space<vmem>>, vector<128x128xbf16>
    %cst = arith.constant dense<0.000000e+00> : vector<8x128xf32>
    %2 = tpu.matmul %0, %1, %cst {dimension_numbers = #tpu.dot_dimension_numbers<[1], [1], [0], [0], [0, 0, 1, 0], [], []>} : vector<8x128xbf16>, vector<128x128xbf16>, vector<8x128xf32> -> vector<8x128xf32>
    %c0_3 = arith.constant 0 : index
    %c0_4 = arith.constant 0 : index
    %3 = vector.load %arg4[%c0_3, %c0_4] : memref<1x128xf32, #tpu.memory_space<vmem>>, vector<1x128xf32>
    %4 = vector.broadcast %3 : vector<1x128xf32> to vector<8x128xf32>
    %5 = arith.addf %2, %4 : vector<8x128xf32>
    %c0_5 = arith.constant 0 : index
    %c0_6 = arith.constant 0 : index
    %6 = vector.load %arg5[%c0_5, %c0_6] : memref<8x128xf32, #tpu.memory_space<vmem>>, vector<8x128xf32>
    tpu.vector_store %arg5[%c0_5, %c0_6], %5 {strides = array<i32>} : memref<8x128xf32, #tpu.memory_space<vmem>>, vector<8x128xf32>,
    return
  }
  func.func @transform_0(%arg0: i32, %arg1: i32) -> (i32, i32) {
    %c0_i32 = arith.constant 0 : i32
    %c0_i32_0 = arith.constant 0 : i32
    return %arg0, %c0_i32 : i32, i32
  }
  func.func @transform_1(%arg0: i32, %arg1: i32) -> (i32, i32) {
    %c0_i32 = arith.constant 0 : i32
    %c0_i32_0 = arith.constant 0 : i32
    return %arg1, %c0_i32 : i32, i32
  }
  func.func @transform_2(%arg0: i32, %arg1: i32) -> (i32, i32) {
    %c0_i32 = arith.constant 0 : i32
    %c0_i32_0 = arith.constant 0 : i32
    return %c0_i32, %arg1 : i32, i32
  }
  func.func @transform_3(%arg0: i32, %arg1: i32) -> (i32, i32) {
    %c0_i32 = arith.constant 0 : i32
    return %arg0, %arg1 : i32, i32
  }
}

</mosaic_0001>

<llo_original>
// kernel: tpu_custom_call.1
$region0: #{tpu_custom_call.1}
  #allocation0 [shape = 'u32[]', space=smem, size = 0x4, offset = 0x4, fixed_abs, tag = 'smem constant byte address 0x4 - core index']
  #allocation1 [shape = 'u32[72,128]{1,0:T(1,128)}', space=vmem, size = 0x9000, scoped, tag = 'internal scratch']
  %s0 = inlined_call_operand.hbm [shape: bf16[8,128], index: 0, kind: input, shape index: {}]
  %s1 = inlined_call_operand.hbm [shape: bf16[128,128], index: 1, kind: input, shape index: {}]
  %s2 = inlined_call_operand.vmem [shape: f32[1,128], index: 2, kind: input, shape index: {}]
  %s3 = inlined_call_operand.hbm [shape: f32[8,128], index: 3, kind: output, shape index: {}]
  %s4 = sld [smem:[#allocation0]]
  $region30: #{tpu_custom_call.1} parent=0
    _
  %s6 = ssub.s32 1, %s4
  %s7 = scalar_select 0, %s6, %s4
  $region1: #{tpu_custom_call.1} parent=0
    #allocation2 [shape = 'u8[2048]{0}', space=vmem, size = 0x800, scoped, tag = 'input window, operand 0, single buffered']
    #allocation3 [shape = 's32[1]{0}', space=sflag, size = 0x4, scoped, tag = 'scoped memory for tpu_custom_call.1']
    #allocation4 [shape = 's32[1]{0}', space=sflag, size = 0x4, scoped, tag = 'scoped memory for tpu_custom_call.1']
    #allocation5 [shape = 'u8[32768]{0}', space=vmem, size = 0x8000, scoped, tag = 'input window, operand 1, single buffered']
    #allocation6 [shape = 's32[1]{0}', space=sflag, size = 0x4, scoped, tag = 'scoped memory for tpu_custom_call.1']
    #allocation7 [shape = 'u8[4096]{0}', space=vmem, size = 0x1000, scoped, tag = 'output window, operand 0, single buffered']
    %8 = vsyncpa [#allocation3], 0
    %9 = vsyncpa [#allocation6], 0
    %10 = vsyncpa [#allocation4], 0
    // Predicated region
    $region2: #{tpu_custom_call.1} parent=1 // pred_check
      _
    $region3: #{tpu_custom_call.1} parent=1 // pred_check_branch
      %12 = sbr.rel (0) target = $region5
    $region4: #{tpu_custom_call.1} parent=1 // pred_region
      %14 = vsyncadd [#allocation3], 0
      %s16 = sshll.u32 %s0, 4
      %s17 = int_to_ptr.hbm [resolvable:$true] %s16
      %s18 = sshll.u32 [#allocation2], 4
      %s19 = int_to_ptr.vmem [resolvable:$true] %s18
      %21 = dma.hbm_to_vmem [thread:$0]  %s17, 64, %s19, [#allocation3]
    $region5: #{tpu_custom_call.1} parent=1 // pred_fallthru
      _
    // Predicated region
    $region6: #{tpu_custom_call.1} parent=1 // pred_check
      _
    $region7: #{tpu_custom_call.1} parent=1 // pred_check_branch
      %23 = sbr.rel (0) target = $region9
    $region8: #{tpu_custom_call.1} parent=1 // pred_region
      %25 = vsyncadd [#allocation6], 0
      %s26 = sshll.u32 %s1, 4
      %s27 = int_to_ptr.hbm [resolvable:$true] %s26
      %s28 = sshll.u32 [#allocation5], 4
      %s29 = int_to_ptr.vmem [resolvable:$true] %s28
      %34 = dma.hbm_to_vmem [thread:$0]  %s27, 1024, %s29, [#allocation6], 64, 64, 4
    $region9: #{tpu_custom_call.1} parent=1 // pred_fallthru
      _
    // Predicated region
    $region10: #{tpu_custom_call.1} parent=1 // pred_check
      _
    $region11: #{tpu_custom_call.1} parent=1 // pred_check_branch
      %36 = sbr.rel (0) target = $region13
    $region12: #{tpu_custom_call.1} parent=1 // pred_region
      _
    $region13: #{tpu_custom_call.1} parent=1 // pred_fallthru
      _
    // Predicated region
    $region14: #{tpu_custom_call.1} parent=1 // pred_check
      _
    $region15: #{tpu_custom_call.1} parent=1 // pred_check_branch
      %38 = sbr.rel (0) target = $region17
    $region16: #{tpu_custom_call.1} parent=1 // pred_region
      %40 = dma.done [#allocation3], 64
    $region17: #{tpu_custom_call.1} parent=1 // pred_fallthru
      _
    // Predicated region
    $region18: #{tpu_custom_call.1} parent=1 // pred_check
      _
    $region19: #{tpu_custom_call.1} parent=1 // pred_check_branch
      %42 = sbr.rel (0) target = $region21
    $region20: #{tpu_custom_call.1} parent=1 // pred_region
      %44 = dma.done [#allocation6], 1024
    $region21: #{tpu_custom_call.1} parent=1 // pred_fallthru
      _
    %v45 = vld [vmem:[#allocation2] sm:$0xf]
    %v46 = vld [vmem:[#allocation5] sm:$0xf]
    %v47 = vld [vmem:[#allocation5 + $0x4] sm:$0xf]
    %v48 = vld [vmem:[#allocation5 + $0x8] sm:$0xf]
    %v49 = vld [vmem:[#allocation5 + $0xc] sm:$0xf]
    %v50 = vld [vmem:[#allocation5 + $0x10] sm:$0xf]
    %v51 = vld [vmem:[#allocation5 + $0x14] sm:$0xf]
    %v52 = vld [vmem:[#allocation5 + $0x18] sm:$0xf]
    %v53 = vld [vmem:[#allocation5 + $0x1c] sm:$0xf]
    %v54 = vld [vmem:[#allocation5 + $0x20] sm:$0xf]
    %v55 = vld [vmem:[#allocation5 + $0x24] sm:$0xf]
    %v56 = vld [vmem:[#allocation5 + $0x28] sm:$0xf]
    %v57 = vld [vmem:[#allocation5 + $0x2c] sm:$0xf]
    %v58 = vld [vmem:[#allocation5 + $0x30] sm:$0xf]
    %v59 = vld [vmem:[#allocation5 + $0x34] sm:$0xf]
    %v60 = vld [vmem:[#allocation5 + $0x38] sm:$0xf]
    %v61 = vld [vmem:[#allocation5 + $0x3c] sm:$0xf]
    %v62 = vld [vmem:[%s2] sm:$0x1]
    %v64 = vperm.slane %v62, 0
    %v82 = vunpack.c.l.b16 %v46
    %v83 = vunpack.c.l.b16 %v47
    %v84 = vunpack.c.l.b16 %v48
    %v85 = vunpack.c.l.b16 %v49
    %v86 = vunpack.c.l.b16 %v50
    %v87 = vunpack.c.l.b16 %v51
    %v88 = vunpack.c.l.b16 %v52
    %v89 = vunpack.c.l.b16 %v53
    %v90 = vunpack.c.l.b16 %v54
    %v91 = vunpack.c.l.b16 %v55
    %v92 = vunpack.c.l.b16 %v56
    %v93 = vunpack.c.l.b16 %v57
    %v94 = vunpack.c.l.b16 %v58
    %v95 = vunpack.c.l.b16 %v59
    %v96 = vunpack.c.l.b16 %v60
    %v97 = vunpack.c.l.b16 %v61
    %v98 = vpack.c.b16 %v83, %v82
    %v99 = vpack.c.b16 %v85, %v84
    %v100 = vpack.c.b16 %v87, %v86
    %v101 = vpack.c.b16 %v89, %v88
    %v102 = vpack.c.b16 %v91, %v90
    %v103 = vpack.c.b16 %v93, %v92
    %v104 = vpack.c.b16 %v95, %v94
    %v105 = vpack.c.b16 %v97, %v96
    %114 = vmatpush.bf16.xpose.msra.mxu0 %v105
    %115 = vmatpush.bf16.xpose.msra.mxu0 %v104
    %116 = vmatpush.bf16.xpose.msra.mxu0 %v103
    %117 = vmatpush.bf16.xpose.msra.mxu0 %v102
    %118 = vmatpush.bf16.xpose.msra.mxu0 %v101
    %119 = vmatpush.bf16.xpose.msra.mxu0 %v100
    %120 = vmatpush.bf16.xpose.msra.mxu0 %v99
    %121 = vmatpush.bf16.xpose.msra.mxu0 %v98
    %122 = vmatmul.bf16.gmra.mxu0 %v45
    %v123 = vpop.f32.mrf.mxu0
    %v124 = vadd.f32 %v64, %v123
    %v125 = vpop.f32.mrf.mxu0
    %126 = vdwg.mxu0
    %127 = vst [vmem:[#allocation7] sm:$0xff] %v124
    // Predicated region
    $region22: #{tpu_custom_call.1} parent=1 // pred_check
      _
    $region23: #{tpu_custom_call.1} parent=1 // pred_check_branch
      %129 = sbr.rel (0) target = $region25
    $region24: #{tpu_custom_call.1} parent=1 // pred_region
      %131 = vsyncadd [#allocation4], 0
      %s133 = sshll.u32 [#allocation7], 4
      %s134 = int_to_ptr.vmem [resolvable:$true] %s133
      %s135 = sshll.u32 %s3, 4
      %s136 = int_to_ptr.hbm [resolvable:$true] %s135
      %138 = dma.vmem_to_hbm [thread:$0]  %s134, 128, %s136, [#allocation4]
    $region25: #{tpu_custom_call.1} parent=1 // pred_fallthru
      _
    // Predicated region
    $region26: #{tpu_custom_call.1} parent=1 // pred_check
      _
    $region27: #{tpu_custom_call.1} parent=1 // pred_check_branch
      %140 = sbr.rel (0) target = $region29
    $region28: #{tpu_custom_call.1} parent=1 // pred_region
      %142 = dma.done [#allocation4], 128
    $region29: #{tpu_custom_call.1} parent=1 // pred_fallthru
      _
    %143 = vsyncpa [#allocation3], 1
    %144 = vsyncpa [#allocation6], 1
    %145 = vsyncpa [#allocation4], 1

</llo_original>
